<compile_context>
chip_gen: v5e
topology: v5e:2x2
jax: 0.10.0
libtpu: 0.0.40
codegen_flags: <defaults>
</compile_context>

<pallas_src>
import functools

import jax
import jax.numpy as jnp
from jax.experimental import pallas as pl
from jax.experimental.pallas import tpu as pltpu


def _vision_kernel(seed_ref, x_ref, wc_ref, bc_ref, pw_ref, wf_ref, bf_ref, o_ref,
                   *, W, HWp, L, TB, p_dropout, training):
    # x_ref : (C, TB*HWp) bf16   wc_ref: (72, C) bf16 (9 taps x 8 out channels)
    # bc_ref: (8, 1) f32         pw_ref: (1, L) f32   (valid mask * 1/(Ho*Wo))
    # wf_ref: (8, ncls) f32      bf_ref: (1, ncls) f32
    # o_ref : (TB, ncls) f32
    OC = 8
    KH = KW = 3
    Gp = TB * HWp
    La = Gp - ((KH - 1) * W + (KW - 1))

    wc = wc_ref[...]      # (72, C)   bf16
    bc = bc_ref[...]      # (8, 1)    f32
    pw = pw_ref[...]      # (1, L)    f32
    wf = wf_ref[...]      # (8, ncls) f32
    bf = bf_ref[...]      # (1, ncls) f32

    # All 9 taps' channel projections for the whole batch block: one MXU matmul.
    y = jnp.dot(wc, x_ref[...], preferred_element_type=jnp.float32)   # (72, Gp) f32

    # 3x3 conv as shift-and-add over the tap axis (9 static lane slices).
    # acc[o, b*HWp + h*W + w] = sum_{kh,kw} y[(kh*3+kw)*8 + o, b*HWp + (h+kh)*W + (w+kw)]
    acc = None
    for kh in range(KH):
        for kw in range(KW):
            t = kh * KW + kw
            s = kh * W + kw
            part = y[t * OC:(t + 1) * OC, s:s + La]                    # (8, La)
            acc = part if acc is None else acc + part

    # Bias + ReLU (f32, lane-dense).  Lanes that are not valid conv outputs
    # hold garbage here; the pooling mask zeroes them below.
    act = jnp.maximum(acc + bc, 0.0)                                   # (8, La)

    if training and p_dropout > 0.0:
        # One seed / one draw per grid step; lane b of the draw masks sample b.
        pltpu.prng_seed(seed_ref[0] + pl.program_id(0) * 668265261)
        thr = jnp.uint32(min(int(p_dropout * 4294967296.0), 4294967295))
        inv_keep = 1.0 / (1.0 - p_dropout)
        bits = pltpu.bitcast(pltpu.prng_random_bits((OC, 128)), jnp.uint32)
        keep = (bits >= thr).astype(jnp.float32) * inv_keep            # (8, 128)

    for b in range(TB):
        # Global average pool over this sample's valid Ho*Wo positions
        # (lane reduce; the 1/(Ho*Wo) factor and valid mask are folded into pw).
        feat = jnp.sum(act[:, b * HWp:b * HWp + L] * pw, axis=1, keepdims=True)  # (8, 1)
        if training and p_dropout > 0.0:
            feat = feat * keep[:, b:b + 1]
        # Linear(8 -> n_classes) via broadcast-multiply + sublane reduce
        # (avoids any in-kernel transpose of the tiny feature vector).
        row = jnp.sum(feat * wf, axis=0, keepdims=True) + bf           # (1, ncls)
        o_ref[pl.ds(b, 1), :] = row


def vision_net_forward(x, params, *, p_dropout=0.5, training=False, seed=0):
    """x: (B, C, H, W) float32 (NCHW, like PyTorch). Returns (B, n_classes) f32."""
    w_conv, b_conv, w_fc, b_fc = params
    B, C, H, W = x.shape
    KH = KW = 3
    assert w_conv.shape == (8, C, KH, KW)
    assert H >= KH and W >= KW
    Ho, Wo = H - KH + 1, W - KW + 1
    HW = H * W
    HWp = ((HW + 127) // 128) * 128            # lane-pad the spatial axis per sample
    L = HWp - ((KH - 1) * W + (KW - 1))        # per-sample accumulator length
    n_classes = w_fc.shape[0]

    # Batch tile: amortize per-step overhead, capped so the (72, TB*HWp) f32
    # intermediate (plus input/activation buffers) stays well inside scoped VMEM.
    per_sample_bytes = HWp * (KH * KW * 8 * 4 + 2 * 8 * 4 + 2 * 2 * C)
    tb_cap = max(1, int((16 * 1024 * 1024) // per_sample_bytes))
    TB = max(1, min(B, 8, tb_cap))
    B_pad = ((B + TB - 1) // TB) * TB
    # TODO(synk): for very large H*W (where even TB=1 overflows VMEM) the spatial
    # axis would additionally need in-kernel tiling; not needed at these shapes.

    # ---- input prep (cast/pad/transpose; fused by XLA under jit, no im2col) ----
    xf = x.reshape(B, C, HW).astype(jnp.bfloat16)
    if HWp != HW:
        xf = jnp.pad(xf, ((0, 0), (0, 0), (0, HWp - HW)))
    if B_pad != B:
        xf = jnp.pad(xf, ((0, B_pad - B), (0, 0), (0, 0)))
    xf = xf.transpose(1, 0, 2).reshape(C, B_pad * HWp)   # global lane index = b*HWp + p

    # Conv weights stacked tap-major: wc[(kh*3+kw)*8 + o, c] = w_conv[o, c, kh, kw].
    wc = w_conv.transpose(2, 3, 0, 1).reshape(KH * KW * 8, C).astype(jnp.bfloat16)
    bc = b_conv.reshape(8, 1).astype(jnp.float32)
    wf = w_fc.T.astype(jnp.float32)                       # (8, n_classes)
    bf = b_fc.reshape(1, n_classes).astype(jnp.float32)

    # Pooling weights: 1/(Ho*Wo) at valid output positions, 0 elsewhere.
    pidx = jnp.arange(L, dtype=jnp.int32)
    valid = ((pidx % W) < Wo) & ((pidx // W) < Ho)
    pw = (valid.astype(jnp.float32) / float(Ho * Wo)).reshape(1, L)

    seed_arr = jnp.array([seed], dtype=jnp.int32)

    kernel = functools.partial(
        _vision_kernel, W=W, HWp=HWp, L=L, TB=TB,
        p_dropout=float(p_dropout), training=bool(training))

    grid_spec = pltpu.PrefetchScalarGridSpec(
        num_scalar_prefetch=1,
        grid=(B_pad // TB,),
        in_specs=[
            pl.BlockSpec((C, TB * HWp), lambda i, s: (0, i)),          # x (lane-blocked)
            pl.BlockSpec((KH * KW * 8, C), lambda i, s: (0, 0)),       # conv weights
            pl.BlockSpec((8, 1), lambda i, s: (0, 0)),                 # conv bias
            pl.BlockSpec((1, L), lambda i, s: (0, 0)),                 # pool weights
            pl.BlockSpec((8, n_classes), lambda i, s: (0, 0)),         # fc weight
            pl.BlockSpec((1, n_classes), lambda i, s: (0, 0)),         # fc bias
        ],
        out_specs=pl.BlockSpec((TB, n_classes), lambda i, s: (i, 0)),
        scratch_shapes=[],
    )

    out = pl.pallas_call(
        kernel,
        out_shape=jax.ShapeDtypeStruct((B_pad, n_classes), jnp.float32),
        grid_spec=grid_spec,
        compiler_params=pltpu.CompilerParams(
            dimension_semantics=("parallel",)),
    )(seed_arr, xf, wc, bc, pw, wf, bf)

    return out[:B] if B_pad != B else out


def _reference_forward(x, params):
    """Pure-JAX reference (eval mode). Inputs rounded to bf16 like the kernel's
    MXU feed; everything else in f32."""
    w_conv, b_conv, w_fc, b_fc = params
    xr = x.astype(jnp.bfloat16).astype(jnp.float32)
    wr = w_conv.astype(jnp.bfloat16).astype(jnp.float32)
    conv = jax.lax.conv_general_dilated(
        xr, wr, window_strides=(1, 1), padding="VALID",
        dimension_numbers=("NCHW", "OIHW", "NCHW"),
        precision=jax.lax.Precision.HIGHEST,
    ) + b_conv.reshape(1, -1, 1, 1)
    act = jnp.maximum(conv, 0.0)
    feat = jnp.mean(act, axis=(2, 3))                               # (B, 8)
    return jnp.dot(feat, w_fc.T, precision=jax.lax.Precision.HIGHEST) + b_fc


if __name__ == "__main__":
    B, C, H, W = 2, 4, 16, 16
    n_classes = 10

    key = jax.random.PRNGKey(0)
    kx, k1, k2, k3, k4 = jax.random.split(key, 5)

    x = jax.random.normal(kx, (B, C, H, W), dtype=jnp.float32)
    w_conv = jax.random.uniform(k1, (8, C, 3, 3), jnp.float32, -0.3, 0.3)
    b_conv = jax.random.uniform(k2, (8,), jnp.float32, -0.1, 0.1)
    w_fc = jax.random.uniform(k3, (n_classes, 8), jnp.float32, -0.3, 0.3)
    b_fc = jax.random.uniform(k4, (n_classes,), jnp.float32, -0.1, 0.1)
    params = (w_conv, b_conv, w_fc, b_fc)

    # Eval-mode forward (dropout is identity, deterministic). jit fuses the
    # wrapper-side cast/pad/transpose prep with the pallas_call.
    fwd = jax.jit(lambda xx: vision_net_forward(xx, params, p_dropout=0.5, training=False))
    out = jax.block_until_ready(fwd(x))

    ref = _reference_forward(x, params)
    assert out.shape == (B, n_classes)
    assert jnp.allclose(out, ref, atol=2e-3, rtol=2e-3), (out, ref)

    print("KERNEL_OK")
</pallas_src>

<mosaic_0001>
module attributes {stable_mosaic.version = 11 : i64} {
  func.func @_vision_kernel(%arg0: i32, %arg1: memref<1xi32, #tpu.memory_space<smem>>, %arg2: memref<4x512xbf16, #tpu.memory_space<vmem>>, %arg3: memref<72x4xbf16, #tpu.memory_space<vmem>>, %arg4: memref<8x1xf32, #tpu.memory_space<vmem>>, %arg5: memref<1x222xf32, #tpu.memory_space<vmem>>, %arg6: memref<8x10xf32, #tpu.memory_space<vmem>>, %arg7: memref<1x10xf32, #tpu.memory_space<vmem>>, %arg8: memref<2x10xf32, #tpu.memory_space<vmem>>) attributes {dimension_semantics = [#tpu.dimension_semantics<parallel>], iteration_bounds = array<i64: 1>, scalar_prefetch = 1 : i64, scratch_operands = 0 : i64, tpu.core_type = #tpu.core_type<tc>, window_params = [{transform_indices = @transform_0, window_bounds = array<i64: 4, 512>}, {pipeline_mode = #tpu.pipeline_mode<synchronous>, transform_indices = @transform_1, window_bounds = array<i64: 72, 4>}, {pipeline_mode = #tpu.pipeline_mode<synchronous>, transform_indices = @transform_2, window_bounds = array<i64: 8, 1>}, {pipeline_mode = #tpu.pipeline_mode<synchronous>, transform_indices = @transform_3, window_bounds = array<i64: 1, 222>}, {pipeline_mode = #tpu.pipeline_mode<synchronous>, transform_indices = @transform_4, window_bounds = array<i64: 8, 10>}, {pipeline_mode = #tpu.pipeline_mode<synchronous>, transform_indices = @transform_5, window_bounds = array<i64: 1, 10>}, {transform_indices = @transform_6, window_bounds = array<i64: 2, 10>}]} {
    %c0 = arith.constant 0 : index
    %c0_0 = arith.constant 0 : index
    %0 = vector.load %arg3[%c0, %c0_0] : memref<72x4xbf16, #tpu.memory_space<vmem>>, vector<72x4xbf16>
    %c0_1 = arith.constant 0 : index
    %c0_2 = arith.constant 0 : index
    %1 = vector.load %arg4[%c0_1, %c0_2] : memref<8x1xf32, #tpu.memory_space<vmem>>, vector<8x1xf32>
    %c0_3 = arith.constant 0 : index
    %c0_4 = arith.constant 0 : index
    %2 = vector.load %arg5[%c0_3, %c0_4] : memref<1x222xf32, #tpu.memory_space<vmem>>, vector<1x222xf32>
    %c0_5 = arith.constant 0 : index
    %c0_6 = arith.constant 0 : index
    %3 = vector.load %arg6[%c0_5, %c0_6] : memref<8x10xf32, #tpu.memory_space<vmem>>, vector<8x10xf32>
    %c0_7 = arith.constant 0 : index
    %c0_8 = arith.constant 0 : index
    %4 = vector.load %arg7[%c0_7, %c0_8] : memref<1x10xf32, #tpu.memory_space<vmem>>, vector<1x10xf32>
    %c0_9 = arith.constant 0 : index
    %c0_10 = arith.constant 0 : index
    %5 = vector.load %arg2[%c0_9, %c0_10] : memref<4x512xbf16, #tpu.memory_space<vmem>>, vector<4x512xbf16>
    %cst = arith.constant dense<0.000000e+00> : vector<72x512xf32>
    %6 = tpu.matmul %0, %5, %cst {dimension_numbers = #tpu.dot_dimension_numbers<[1], [0], [0], [1], [0, 0, 1, 1], [], []>} : vector<72x4xbf16>, vector<4x512xbf16>, vector<72x512xf32> -> vector<72x512xf32>
    %7 = vector.extract_strided_slice %6 {offsets = [0, 0], sizes = [8, 478], strides = [1, 1]} : vector<72x512xf32> to vector<8x478xf32>
    %8 = vector.extract_strided_slice %6 {offsets = [8, 1], sizes = [8, 478], strides = [1, 1]} : vector<72x512xf32> to vector<8x478xf32>
    %9 = arith.addf %7, %8 : vector<8x478xf32>
    %10 = vector.extract_strided_slice %6 {offsets = [16, 2], sizes = [8, 478], strides = [1, 1]} : vector<72x512xf32> to vector<8x478xf32>
    %11 = arith.addf %9, %10 : vector<8x478xf32>
    %12 = vector.extract_strided_slice %6 {offsets = [24, 16], sizes = [8, 478], strides = [1, 1]} : vector<72x512xf32> to vector<8x478xf32>
    %13 = arith.addf %11, %12 : vector<8x478xf32>
    %14 = vector.extract_strided_slice %6 {offsets = [32, 17], sizes = [8, 478], strides = [1, 1]} : vector<72x512xf32> to vector<8x478xf32>
    %15 = arith.addf %13, %14 : vector<8x478xf32>
    %16 = vector.extract_strided_slice %6 {offsets = [40, 18], sizes = [8, 478], strides = [1, 1]} : vector<72x512xf32> to vector<8x478xf32>
    %17 = arith.addf %15, %16 : vector<8x478xf32>
    %18 = vector.extract_strided_slice %6 {offsets = [48, 32], sizes = [8, 478], strides = [1, 1]} : vector<72x512xf32> to vector<8x478xf32>
    %19 = arith.addf %17, %18 : vector<8x478xf32>
    %20 = vector.extract_strided_slice %6 {offsets = [56, 33], sizes = [8, 478], strides = [1, 1]} : vector<72x512xf32> to vector<8x478xf32>
    %21 = arith.addf %19, %20 : vector<8x478xf32>
    %22 = vector.extract_strided_slice %6 {offsets = [64, 34], sizes = [8, 478], strides = [1, 1]} : vector<72x512xf32> to vector<8x478xf32>
    %23 = arith.addf %21, %22 : vector<8x478xf32>
    %24 = vector.broadcast %1 : vector<8x1xf32> to vector<8x478xf32>
    %25 = arith.addf %23, %24 : vector<8x478xf32>
    %cst_11 = arith.constant 0.000000e+00 : f32
    %26 = vector.broadcast %cst_11 : f32 to vector<8x478xf32>
    %27 = arith.maximumf %25, %26 : vector<8x478xf32>
    %28 = vector.extract_strided_slice %27 {offsets = [0, 0], sizes = [8, 222], strides = [1, 1]} : vector<8x478xf32> to vector<8x222xf32>
    %29 = vector.broadcast %2 : vector<1x222xf32> to vector<8x222xf32>
    %30 = arith.mulf %28, %29 : vector<8x222xf32>
    %cst_12 = arith.constant dense<0.000000e+00> : vector<8xf32>
    %31 = vector.multi_reduction <add>, %30, %cst_12 [1] : vector<8x222xf32> to vector<8xf32>
    %32 = vector.shape_cast %31 : vector<8xf32> to vector<8x1xf32>
    %33 = vector.broadcast %32 : vector<8x1xf32> to vector<8x10xf32>
    %34 = arith.mulf %33, %3 : vector<8x10xf32>
    %cst_13 = arith.constant dense<0.000000e+00> : vector<10xf32>
    %35 = vector.multi_reduction <add>, %34, %cst_13 [0] : vector<8x10xf32> to vector<10xf32>
    %36 = vector.shape_cast %35 : vector<10xf32> to vector<1x10xf32>
    %37 = arith.addf %36, %4 : vector<1x10xf32>
    %c0_14 = arith.constant 0 : index
    %c0_15 = arith.constant 0 : index
    %38 = vector.load %arg8[%c0_14, %c0_15] : memref<2x10xf32, #tpu.memory_space<vmem>>, vector<1x10xf32>
    tpu.vector_store %arg8[%c0_14, %c0_15], %37 {strides = array<i32>} : memref<2x10xf32, #tpu.memory_space<vmem>>, vector<1x10xf32>,
    %39 = vector.extract_strided_slice %27 {offsets = [0, 256], sizes = [8, 222], strides = [1, 1]} : vector<8x478xf32> to vector<8x222xf32>
    %40 = vector.broadcast %2 : vector<1x222xf32> to vector<8x222xf32>
    %41 = arith.mulf %39, %40 : vector<8x222xf32>
    %cst_16 = arith.constant dense<0.000000e+00> : vector<8xf32>
    %42 = vector.multi_reduction <add>, %41, %cst_16 [1] : vector<8x222xf32> to vector<8xf32>
    %43 = vector.shape_cast %42 : vector<8xf32> to vector<8x1xf32>
    %44 = vector.broadcast %43 : vector<8x1xf32> to vector<8x10xf32>
    %45 = arith.mulf %44, %3 : vector<8x10xf32>
    %cst_17 = arith.constant dense<0.000000e+00> : vector<10xf32>
    %46 = vector.multi_reduction <add>, %45, %cst_17 [0] : vector<8x10xf32> to vector<10xf32>
    %47 = vector.shape_cast %46 : vector<10xf32> to vector<1x10xf32>
    %48 = arith.addf %47, %4 : vector<1x10xf32>
    %c1 = arith.constant 1 : index
    %c0_18 = arith.constant 0 : index
    %49 = vector.load %arg8[%c1, %c0_18] : memref<2x10xf32, #tpu.memory_space<vmem>>, vector<1x10xf32>
    tpu.vector_store %arg8[%c1, %c0_18], %48 {strides = array<i32>} : memref<2x10xf32, #tpu.memory_space<vmem>>, vector<1x10xf32>,
    return
  }
  func.func @transform_0(%arg0: i32, %arg1: memref<1xi32, #tpu.memory_space<smem>>) -> (i32, i32) {
    %c0_i32 = arith.constant 0 : i32
    %c0_i32_0 = arith.constant 0 : i32
    return %c0_i32, %arg0 : i32, i32
  }
  func.func @transform_1(%arg0: i32, %arg1: memref<1xi32, #tpu.memory_space<smem>>) -> (i32, i32) {
    %c0_i32 = arith.constant 0 : i32
    %c0_i32_0 = arith.constant 0 : i32
    %c0_i32_1 = arith.constant 0 : i32
    return %c0_i32, %c0_i32_0 : i32, i32
  }
  func.func @transform_2(%arg0: i32, %arg1: memref<1xi32, #tpu.memory_space<smem>>) -> (i32, i32) {
    %c0_i32 = arith.constant 0 : i32
    %c0_i32_0 = arith.constant 0 : i32
    %c0_i32_1 = arith.constant 0 : i32
    return %c0_i32, %c0_i32_0 : i32, i32
  }
  func.func @transform_3(%arg0: i32, %arg1: memref<1xi32, #tpu.memory_space<smem>>) -> (i32, i32) {
    %c0_i32 = arith.constant 0 : i32
    %c0_i32_0 = arith.constant 0 : i32
    %c0_i32_1 = arith.constant 0 : i32
    return %c0_i32, %c0_i32_0 : i32, i32
  }
  func.func @transform_4(%arg0: i32, %arg1: memref<1xi32, #tpu.memory_space<smem>>) -> (i32, i32) {
    %c0_i32 = arith.constant 0 : i32
    %c0_i32_0 = arith.constant 0 : i32
    %c0_i32_1 = arith.constant 0 : i32
    return %c0_i32, %c0_i32_0 : i32, i32
  }
  func.func @transform_5(%arg0: i32, %arg1: memref<1xi32, #tpu.memory_space<smem>>) -> (i32, i32) {
    %c0_i32 = arith.constant 0 : i32
    %c0_i32_0 = arith.constant 0 : i32
    %c0_i32_1 = arith.constant 0 : i32
    return %c0_i32, %c0_i32_0 : i32, i32
  }
  func.func @transform_6(%arg0: i32, %arg1: memref<1xi32, #tpu.memory_space<smem>>) -> (i32, i32) {
    %c0_i32 = arith.constant 0 : i32
    %c0_i32_0 = arith.constant 0 : i32
    return %arg0, %c0_i32 : i32, i32
  }
}

</mosaic_0001>

<llo_original>
// kernel: _lambda_.1
$region0: #{_lambda_.1}
  #allocation0 [shape = 'u32[]', space=smem, size = 0x4, offset = 0x4, fixed_abs, tag = 'smem constant byte address 0x4 - core index']
  #allocation1 [shape = 'u32[72,128]{1,0:T(1,128)}', space=vmem, size = 0x9000, scoped, tag = 'internal scratch']
  #allocation2 [shape = 's32[1]{0}', space=sflag, size = 0x4, scoped, tag = 'scoped memory for _lambda_.1']
  #allocation3 [shape = 's32[1]{0:T(128)S(6)}', space=smem, size = 0x200, scoped, tag = 'prefetched SMEM operand 0']
  %s0 = inlined_call_operand.<no memory space> [shape: s32[1], index: 0, kind: input, shape index: {}]
  %s1 = inlined_call_operand.vmem [shape: bf16[4,512], index: 1, kind: input, shape index: {}]
  %s2 = inlined_call_operand.vmem [shape: bf16[72,4], index: 2, kind: input, shape index: {}]
  %s3 = inlined_call_operand.vmem [shape: f32[8,1], index: 3, kind: input, shape index: {}]
  %s4 = inlined_call_operand.vmem [shape: f32[1,222], index: 4, kind: input, shape index: {}]
  %s5 = inlined_call_operand.vmem [shape: f32[8,10], index: 5, kind: input, shape index: {}]
  %s6 = inlined_call_operand.vmem [shape: f32[1,10], index: 6, kind: input, shape index: {}]
  %s7 = inlined_call_operand.hbm [shape: f32[2,10], index: 7, kind: output, shape index: {}]
  %s8 = sld [smem:[#allocation0]]
  $region34: #{_lambda_.1} parent=0
    _
  %s10 = ssub.s32 1, %s8
  %s11 = scalar_select 0, %s10, %s8
  %12 = sst [smem:[#allocation3]] %s0
  $region1: #{_lambda_.1} parent=0
    #allocation4 [shape = 'u8[1024]{0}', space=vmem, size = 0x400, scoped, tag = 'output window, operand 0, single buffered']
    #allocation5 [shape = 's32[1]{0}', space=sflag, size = 0x4, scoped, tag = 'scoped memory for _lambda_.1']
    %13 = vsyncpa [#allocation5], 0
    // Predicated region
    $region2: #{_lambda_.1} parent=1 // pred_check
      _
    $region3: #{_lambda_.1} parent=1 // pred_check_branch
      %15 = sbr.rel (0) target = $region5
    $region4: #{_lambda_.1} parent=1 // pred_region
      _
    $region5: #{_lambda_.1} parent=1 // pred_fallthru
      _
    // Predicated region
    $region6: #{_lambda_.1} parent=1 // pred_check
      _
    $region7: #{_lambda_.1} parent=1 // pred_check_branch
      %17 = sbr.rel (0) target = $region9
    $region8: #{_lambda_.1} parent=1 // pred_region
      _
    $region9: #{_lambda_.1} parent=1 // pred_fallthru
      _
    // Predicated region
    $region10: #{_lambda_.1} parent=1 // pred_check
      _
    $region11: #{_lambda_.1} parent=1 // pred_check_branch
      %19 = sbr.rel (0) target = $region13
    $region12: #{_lambda_.1} parent=1 // pred_region
      _
    $region13: #{_lambda_.1} parent=1 // pred_fallthru
      _
    // Predicated region
    $region14: #{_lambda_.1} parent=1 // pred_check
      _
    $region15: #{_lambda_.1} parent=1 // pred_check_branch
      %21 = sbr.rel (0) target = $region17
    $region16: #{_lambda_.1} parent=1 // pred_region
      _
    $region17: #{_lambda_.1} parent=1 // pred_fallthru
      _
    // Predicated region
    $region18: #{_lambda_.1} parent=1 // pred_check
      _
    $region19: #{_lambda_.1} parent=1 // pred_check_branch
      %23 = sbr.rel (0) target = $region21
    $region20: #{_lambda_.1} parent=1 // pred_region
      _
    $region21: #{_lambda_.1} parent=1 // pred_fallthru
      _
    // Predicated region
    $region22: #{_lambda_.1} parent=1 // pred_check
      _
    $region23: #{_lambda_.1} parent=1 // pred_check_branch
      %25 = sbr.rel (0) target = $region25
    $region24: #{_lambda_.1} parent=1 // pred_region
      _
    $region25: #{_lambda_.1} parent=1 // pred_fallthru
      _
    %v27 = vld [vmem:[%s2] sm:$0xf]
    %v28 = vld [vmem:[%s2 + $0x4] sm:$0xf]
    %v29 = vld [vmem:[%s2 + $0x8] sm:$0xf]
    %v30 = vld [vmem:[%s2 + $0xc] sm:$0xf]
    %v31 = vld [vmem:[%s2 + $0x10] sm:$0xf]
    %v32 = vld [vmem:[%s2 + $0x14] sm:$0xf]
    %v33 = vld [vmem:[%s2 + $0x18] sm:$0xf]
    %v34 = vld [vmem:[%s2 + $0x1c] sm:$0xf]
    %v35 = vld [vmem:[%s2 + $0x20] sm:$0xf]
    %v36 = vld [vmem:[%s3] sm:$0xff]
    %v37 = vld [vmem:[%s4] sm:$0x3]
    %v38 = vld [vmem:[%s5] sm:$0xff]
    %v39 = vld [vmem:[%s6] sm:$0x1]
    %v40 = vld [vmem:[%s1] sm:$0xff]
    %v50 = vunpack.c.l.b16 %v27
    %v51 = vunpack.c.l.b16 %v28
    %v52 = vunpack.c.l.b16 %v29
    %v53 = vunpack.c.l.b16 %v30
    %v54 = vunpack.c.l.b16 %v31
    %v55 = vunpack.c.l.b16 %v32
    %v56 = vunpack.c.l.b16 %v33
    %v57 = vunpack.c.l.b16 %v34
    %v58 = vunpack.c.l.b16 %v35
    %v59 = vpack.c.b16 %v51, %v50
    %v60 = vpack.c.b16 %v53, %v52
    %v61 = vpack.c.b16 %v55, %v54
    %v62 = vpack.c.b16 %v57, %v56
    %v63 = vpack.c.b16 %v58, %v58
    %65 = vst [vmem:[#allocation1] ss:$4 sm:$0xff] %v40
    %v66 = vld.sshfl [vmem:[#allocation1] sm:$0xff pattern:$0x73625140]
    %v67 = vld.sshfl [vmem:[#allocation1 + $0x8] sm:$0xff pattern:$0x73625140]
    %v68 = vld.sshfl [vmem:[#allocation1 + $0x10] sm:$0xff pattern:$0x73625140]
    %v69 = vld.sshfl [vmem:[#allocation1 + $0x18] sm:$0xff pattern:$0x73625140]
    %vm70 = vcmask 31744
    %v72 = vsel %vm70, %v59, 0
    %v75 = vsel %vm70, %v60, 0
    %v78 = vsel %vm70, %v61, 0
    %v81 = vsel %vm70, %v62, 0
    %v84 = vsel %vm70, %v63, 0
    %vm86 = vcmask 1041408
    %v87 = vsel %vm86, %v66, 0
    %v89 = vsel %vm86, %v67, 0
    %v91 = vsel %vm86, %v68, 0
    %v93 = vsel %vm86, %v69, 0
    %95 = vmatpush.bf16.msra.mxu0 0
    %96 = vmatpush.bf16.msra.mxu0 0
    %97 = vmatpush.bf16.msra.mxu0 0
    %98 = vmatpush.bf16.msra.mxu0 0
    %99 = vmatpush.bf16.msra.mxu0 0
    %100 = vmatpush.bf16.msra.mxu0 0
    %101 = vmatpush.bf16.msra.mxu0 0
    %102 = vmatpush.bf16.msra.mxu0 %v87
    %103 = vmatmul.bf16.gmra.mxu0 %v72
    %v104 = vpop.f32.mrf.mxu0
    %v105 = vadd.f32 0.0, %v104
    %v106 = vpop.f32.mrf.mxu0
    %v107 = vadd.f32 0.0, %v106
    %108 = vmatmul.bf16.gmra.mxu0 %v75
    %v109 = vpop.f32.mrf.mxu0
    %v110 = vadd.f32 0.0, %v109
    %v111 = vpop.f32.mrf.mxu0
    %v112 = vadd.f32 0.0, %v111
    %113 = vmatmul.bf16.gmra.mxu0 %v78
    %v114 = vpop.f32.mrf.mxu0
    %v115 = vadd.f32 0.0, %v114
    %v116 = vpop.f32.mrf.mxu0
    %v117 = vadd.f32 0.0, %v116
    %118 = vmatmul.bf16.gmra.mxu0 %v81
    %v119 = vpop.f32.mrf.mxu0
    %v120 = vadd.f32 0.0, %v119
    %v121 = vpop.f32.mrf.mxu0
    %v122 = vadd.f32 0.0, %v121
    %123 = vmatmul.bf16.gmra.mxu0 %v84
    %v124 = vpop.f32.mrf.mxu0
    %v125 = vadd.f32 0.0, %v124
    %v126 = vpop.f32.mrf.mxu0
    %127 = vdwg.mxu0
    %128 = vmatpush.bf16.msra.mxu0 0
    %129 = vmatpush.bf16.msra.mxu0 0
    %130 = vmatpush.bf16.msra.mxu0 0
    %131 = vmatpush.bf16.msra.mxu0 0
    %132 = vmatpush.bf16.msra.mxu0 0
    %133 = vmatpush.bf16.msra.mxu0 0
    %134 = vmatpush.bf16.msra.mxu0 0
    %135 = vmatpush.bf16.msra.mxu0 %v89
    %136 = vmatmul.bf16.gmra.mxu0 %v72
    %v137 = vpop.f32.mrf.mxu0
    %v138 = vadd.f32 0.0, %v137
    %v139 = vpop.f32.mrf.mxu0
    %v140 = vadd.f32 0.0, %v139
    %141 = vmatmul.bf16.gmra.mxu0 %v75
    %v142 = vpop.f32.mrf.mxu0
    %v143 = vadd.f32 0.0, %v142
    %v144 = vpop.f32.mrf.mxu0
    %v145 = vadd.f32 0.0, %v144
    %146 = vmatmul.bf16.gmra.mxu0 %v78
    %v147 = vpop.f32.mrf.mxu0
    %v148 = vadd.f32 0.0, %v147
    %v149 = vpop.f32.mrf.mxu0
    %v150 = vadd.f32 0.0, %v149
    %151 = vmatmul.bf16.gmra.mxu0 %v81
    %v152 = vpop.f32.mrf.mxu0
    %v153 = vadd.f32 0.0, %v152
    %v154 = vpop.f32.mrf.mxu0
    %v155 = vadd.f32 0.0, %v154
    %156 = vmatmul.bf16.gmra.mxu0 %v84
    %v157 = vpop.f32.mrf.mxu0
    %v158 = vadd.f32 0.0, %v157
    %v159 = vpop.f32.mrf.mxu0
    %160 = vdwg.mxu0
    %161 = vmatpush.bf16.msra.mxu0 0
    %162 = vmatpush.bf16.msra.mxu0 0
    %163 = vmatpush.bf16.msra.mxu0 0
    %164 = vmatpush.bf16.msra.mxu0 0
    %165 = vmatpush.bf16.msra.mxu0 0
    %166 = vmatpush.bf16.msra.mxu0 0
    %167 = vmatpush.bf16.msra.mxu0 0
    %168 = vmatpush.bf16.msra.mxu0 %v91
    %169 = vmatmul.bf16.gmra.mxu0 %v72
    %v170 = vpop.f32.mrf.mxu0
    %v171 = vadd.f32 0.0, %v170
    %v172 = vpop.f32.mrf.mxu0
    %v173 = vadd.f32 0.0, %v172
    %174 = vmatmul.bf16.gmra.mxu0 %v75
    %v175 = vpop.f32.mrf.mxu0
    %v176 = vadd.f32 0.0, %v175
    %v177 = vpop.f32.mrf.mxu0
    %v178 = vadd.f32 0.0, %v177
    %179 = vmatmul.bf16.gmra.mxu0 %v78
    %v180 = vpop.f32.mrf.mxu0
    %v181 = vadd.f32 0.0, %v180
    %v182 = vpop.f32.mrf.mxu0
    %v183 = vadd.f32 0.0, %v182
    %184 = vmatmul.bf16.gmra.mxu0 %v81
    %v185 = vpop.f32.mrf.mxu0
    %v186 = vadd.f32 0.0, %v185
    %v187 = vpop.f32.mrf.mxu0
    %v188 = vadd.f32 0.0, %v187
    %189 = vmatmul.bf16.gmra.mxu0 %v84
    %v190 = vpop.f32.mrf.mxu0
    %v191 = vadd.f32 0.0, %v190
    %v192 = vpop.f32.mrf.mxu0
    %193 = vdwg.mxu0
    %194 = vmatpush.bf16.msra.mxu0 0
    %195 = vmatpush.bf16.msra.mxu0 0
    %196 = vmatpush.bf16.msra.mxu0 0
    %197 = vmatpush.bf16.msra.mxu0 0
    %198 = vmatpush.bf16.msra.mxu0 0
    %199 = vmatpush.bf16.msra.mxu0 0
    %200 = vmatpush.bf16.msra.mxu0 0
    %201 = vmatpush.bf16.msra.mxu0 %v93
    %202 = vmatmul.bf16.gmra.mxu0 %v72
    %v203 = vpop.f32.mrf.mxu0
    %v204 = vadd.f32 0.0, %v203
    %v205 = vpop.f32.mrf.mxu0
    %v206 = vadd.f32 0.0, %v205
    %207 = vmatmul.bf16.gmra.mxu0 %v75
    %v208 = vpop.f32.mrf.mxu0
    %v209 = vadd.f32 0.0, %v208
    %v210 = vpop.f32.mrf.mxu0
    %v211 = vadd.f32 0.0, %v210
    %212 = vmatmul.bf16.gmra.mxu0 %v78
    %v213 = vpop.f32.mrf.mxu0
    %v214 = vadd.f32 0.0, %v213
    %v215 = vpop.f32.mrf.mxu0
    %v216 = vadd.f32 0.0, %v215
    %217 = vmatmul.bf16.gmra.mxu0 %v81
    %v218 = vpop.f32.mrf.mxu0
    %v219 = vadd.f32 0.0, %v218
    %v220 = vpop.f32.mrf.mxu0
    %v221 = vadd.f32 0.0, %v220
    %222 = vmatmul.bf16.gmra.mxu0 %v84
    %v223 = vpop.f32.mrf.mxu0
    %v224 = vadd.f32 0.0, %v223
    %v225 = vpop.f32.mrf.mxu0
    %226 = vdwg.mxu0
    %231 = vrot.lane.b32.xlu0 %v107, 127
    %v232 = vpop.permute.xlu0 %231
    %233 = vrot.lane.b32.xlu0 %v140, 127
    %v234 = vpop.permute.xlu0 %233
    %235 = vrot.lane.b32.xlu0 %v173, 127
    %v236 = vpop.permute.xlu0 %235
    %237 = vrot.lane.b32.xlu0 %v206, 127
    %v238 = vpop.permute.xlu0 %237
    %vm239 = vcmask 1039360
    %v240 = vsel %vm239, %v232, %v234
    %v241 = vsel %vm239, %v234, %v236
    %v242 = vsel %vm239, %v236, %v238
    %v247 = vadd.f32 %v105, %v240
    %v248 = vadd.f32 %v138, %v241
    %v249 = vadd.f32 %v171, %v242
    %v250 = vadd.f32 %v204, %v238
    %255 = vrot.lane.b32.xlu0 %v110, 126
    %v256 = vpop.permute.xlu0 %255
    %257 = vrot.lane.b32.xlu0 %v143, 126
    %v258 = vpop.permute.xlu0 %257
    %259 = vrot.lane.b32.xlu0 %v176, 126
    %v260 = vpop.permute.xlu0 %259
    %261 = vrot.lane.b32.xlu0 %v209, 126
    %v262 = vpop.permute.xlu0 %261
    %vm263 = vcmask 1031168
    %v264 = vsel %vm263, %v256, %v258
    %v265 = vsel %vm263, %v258, %v260
    %v266 = vsel %vm263, %v260, %v262
    %v271 = vadd.f32 %v247, %v264
    %v272 = vadd.f32 %v248, %v265
    %v273 = vadd.f32 %v249, %v266
    %v274 = vadd.f32 %v250, %v262
    %279 = vrot.lane.b32.xlu0 %v112, 112
    %v280 = vpop.permute.xlu0 %279
    %281 = vrot.lane.b32.xlu0 %v145, 112
    %v282 = vpop.permute.xlu0 %281
    %283 = vrot.lane.b32.xlu0 %v178, 112
    %v284 = vpop.permute.xlu0 %283
    %285 = vrot.lane.b32.xlu0 %v211, 112
    %v286 = vpop.permute.xlu0 %285
    %vm287 = vcmask 916480
    %v288 = vsel %vm287, %v280, %v282
    %v289 = vsel %vm287, %v282, %v284
    %v290 = vsel %vm287, %v284, %v286
    %v295 = vadd.f32 %v271, %v288
    %v296 = vadd.f32 %v272, %v289
    %v297 = vadd.f32 %v273, %v290
    %v298 = vadd.f32 %v274, %v286
    %303 = vrot.lane.b32.xlu0 %v115, 111
    %v304 = vpop.permute.xlu0 %303
    %305 = vrot.lane.b32.xlu0 %v148, 111
    %v306 = vpop.permute.xlu0 %305
    %307 = vrot.lane.b32.xlu0 %v181, 111
    %v308 = vpop.permute.xlu0 %307
    %309 = vrot.lane.b32.xlu0 %v214, 111
    %v310 = vpop.permute.xlu0 %309
    %vm311 = vcmask 908288
    %v312 = vsel %vm311, %v304, %v306
    %v313 = vsel %vm311, %v306, %v308
    %v314 = vsel %vm311, %v308, %v310
    %v319 = vadd.f32 %v295, %v312
    %v320 = vadd.f32 %v296, %v313
    %v321 = vadd.f32 %v297, %v314
    %v322 = vadd.f32 %v298, %v310
    %327 = vrot.lane.b32.xlu0 %v117, 110
    %v328 = vpop.permute.xlu0 %327
    %329 = vrot.lane.b32.xlu0 %v150, 110
    %v330 = vpop.permute.xlu0 %329
    %331 = vrot.lane.b32.xlu0 %v183, 110
    %v332 = vpop.permute.xlu0 %331
    %333 = vrot.lane.b32.xlu0 %v216, 110
    %v334 = vpop.permute.xlu0 %333
    %vm335 = vcmask 900096
    %v336 = vsel %vm335, %v328, %v330
    %v337 = vsel %vm335, %v330, %v332
    %v338 = vsel %vm335, %v332, %v334
    %v343 = vadd.f32 %v319, %v336
    %v344 = vadd.f32 %v320, %v337
    %v345 = vadd.f32 %v321, %v338
    %v346 = vadd.f32 %v322, %v334
    %351 = vrot.lane.b32.xlu0 %v120, 96
    %v352 = vpop.permute.xlu0 %351
    %353 = vrot.lane.b32.xlu0 %v153, 96
    %v354 = vpop.permute.xlu0 %353
    %355 = vrot.lane.b32.xlu0 %v186, 96
    %v356 = vpop.permute.xlu0 %355
    %357 = vrot.lane.b32.xlu0 %v219, 96
    %v358 = vpop.permute.xlu0 %357
    %vm359 = vcmask 785408
    %v360 = vsel %vm359, %v352, %v354
    %v361 = vsel %vm359, %v354, %v356
    %v362 = vsel %vm359, %v356, %v358
    %v367 = vadd.f32 %v343, %v360
    %v368 = vadd.f32 %v344, %v361
    %v369 = vadd.f32 %v345, %v362
    %v370 = vadd.f32 %v346, %v358
    %375 = vrot.lane.b32.xlu0 %v122, 95
    %v376 = vpop.permute.xlu0 %375
    %377 = vrot.lane.b32.xlu0 %v155, 95
    %v378 = vpop.permute.xlu0 %377
    %379 = vrot.lane.b32.xlu0 %v188, 95
    %v380 = vpop.permute.xlu0 %379
    %381 = vrot.lane.b32.xlu0 %v221, 95
    %v382 = vpop.permute.xlu0 %381
    %vm383 = vcmask 777216
    %v384 = vsel %vm383, %v376, %v378
    %v385 = vsel %vm383, %v378, %v380
    %v386 = vsel %vm383, %v380, %v382
    %v391 = vadd.f32 %v367, %v384
    %v392 = vadd.f32 %v368, %v385
    %v393 = vadd.f32 %v369, %v386
    %v394 = vadd.f32 %v370, %v382
    %399 = vrot.lane.b32.xlu0 %v125, 94
    %v400 = vpop.permute.xlu0 %399
    %401 = vrot.lane.b32.xlu0 %v158, 94
    %v402 = vpop.permute.xlu0 %401
    %403 = vrot.lane.b32.xlu0 %v191, 94
    %v404 = vpop.permute.xlu0 %403
    %405 = vrot.lane.b32.xlu0 %v224, 94
    %v406 = vpop.permute.xlu0 %405
    %vm407 = vcmask 769024
    %v408 = vsel %vm407, %v400, %v402
    %v409 = vsel %vm407, %v402, %v404
    %v410 = vsel %vm407, %v404, %v406
    %v415 = vadd.f32 %v391, %v408
    %v416 = vadd.f32 %v392, %v409
    %v417 = vadd.f32 %v393, %v410
    %v418 = vadd.f32 %v394, %v406
    %420 = vset.pattern.permute.xlu0 0
    %421 = vperm.xlu0 %420, %v36
    %v422 = vpop.permute.xlu0 %421
    %v424 = vadd.f32 %v415, %v422
    %v425 = vadd.f32 %v416, %v422
    %v426 = vadd.f32 %v417, %v422
    %v427 = vadd.f32 %v418, %v422
    %v428 = vmax.f32 %v424, 0.0
    %v429 = vmax.f32 %v425, 0.0
    %v430 = vmax.f32 %v426, 0.0
    %v431 = vmax.f32 %v427, 0.0
    %v433 = vperm.slane %v37, 0
    %v434 = vperm.slane %v37, 1
    %v437 = vmul.f32 %v428, %v433
    %v438 = vmul.f32 %v429, %v434
    %v439 = vsel %vm407, %v438, 0.0
    %v440 = vadd.f32 %v437, %v439
    %441 = vadd.xlane.f32.xlu0 %v440
    %v442 = vpop.xlane.xlu0 %441
    %v443 = vmul.f32 %v442, %v38
    %vm444 = vcmask 80896
    %v445 = vsel %vm444, %v443, 0.0
    %v446 = vrot.slane %v445, 4
    %v447 = vadd.f32 %v445, %v446
    %v448 = vrot.slane %v447, 2
    %v449 = vadd.f32 %v447, %v448
    %v450 = vrot.slane %v449, 1
    %v451 = vadd.f32 %v449, %v450
    %v452 = vadd.f32 %v451, %v39
    %vm453 = vcmask 73728
    %454 = vst.msk [vmem:[#allocation4] sm:$0x1] %vm453, %v452
    %v455 = vmul.f32 %v430, %v433
    %v456 = vmul.f32 %v431, %v434
    %v457 = vsel %vm407, %v456, 0.0
    %v458 = vadd.f32 %v455, %v457
    %459 = vadd.xlane.f32.xlu0 %v458
    %v460 = vpop.xlane.xlu0 %459
    %v461 = vmul.f32 %v460, %v38
    %v462 = vsel %vm444, %v461, 0.0
    %v463 = vrot.slane %v462, 4
    %v464 = vadd.f32 %v462, %v463
    %v465 = vrot.slane %v464, 2
    %v466 = vadd.f32 %v464, %v465
    %v467 = vrot.slane %v466, 1
    %v468 = vadd.f32 %v466, %v467
    %v469 = vadd.f32 %v468, %v39
    %470 = vst.msk [vmem:[#allocation4 + $0x1] sm:$0x1] %vm453, %v469
    // Predicated region
    $region26: #{_lambda_.1} parent=1 // pred_check
      _
    $region27: #{_lambda_.1} parent=1 // pred_check_branch
      %472 = sbr.rel (0) target = $region29
    $region28: #{_lambda_.1} parent=1 // pred_region
      %474 = vsyncadd [#allocation5], 0
      %s476 = sshll.u32 [#allocation4], 4
      %s477 = int_to_ptr.vmem [resolvable:$true] %s476
      %s478 = sshll.u32 %s7, 4
      %s479 = int_to_ptr.hbm [resolvable:$true] %s478
      %481 = dma.vmem_to_hbm [thread:$0]  %s477, 32, %s479, [#allocation5]
    $region29: #{_lambda_.1} parent=1 // pred_fallthru
      _
    // Predicated region
    $region30: #{_lambda_.1} parent=1 // pred_check
      _
    $region31: #{_lambda_.1} parent=1 // pred_check_branch
      %483 = sbr.rel (0) target = $region33
    $region32: #{_lambda_.1} parent=1 // pred_region
      %485 = dma.done [#allocation5], 32
    $region33: #{_lambda_.1} parent=1 // pred_fallthru
      _
    %486 = vsyncpa [#allocation5], 1

</llo_original>
